<compile_context>
chip_gen: v5e
topology: v5e:2x2
jax: 0.10.0
libtpu: 0.0.40
codegen_flags: <defaults>
</compile_context>

<pallas_src>
import jax
import jax.numpy as jnp
from jax import lax
from jax.experimental import pallas as pl
from jax.experimental.pallas import tpu as pltpu


def _round_up(x, m):
    return (x + m - 1) // m * m


def _select_row_tile(M, d_pad, v_pad, budget_bytes=48 * 1024 * 1024):
    """Largest row tile (<=1024, multiple of 8) fitting the VMEM budget."""
    # Resident weight (bf16) + bias (f32); assume double-buffered worst case.
    fixed = 2 * (v_pad * d_pad * 2) + 2 * (v_pad * 4)
    tm = 1024
    while tm > 8:
        # Double-buffered bf16 x tile + double-buffered f32 output tile.
        per_step = 2 * (tm * d_pad * 2) + 2 * (tm * v_pad * 4)
        if fixed + per_step <= budget_bytes:
            break
        tm //= 2
    tm = max(tm, 8)
    # Don't tile wider than the (8-aligned) problem itself.
    tm = min(tm, _round_up(M, 8))
    return tm


def _proj_logsoftmax_kernel(x_ref, w_ref, b_ref, o_ref):
    # x_ref: (TM, Dp) bf16   w_ref: (V1p, Dp) bf16   b_ref: (1, V1p) f32
    # o_ref: (TM, V1p) f32
    logits = lax.dot_general(
        x_ref[...], w_ref[...],
        dimension_numbers=(((1,), (1,)), ((), ())),   # contract last dims: x @ W^T
        preferred_element_type=jnp.float32,
    ) + b_ref[...]
    m = jnp.max(logits, axis=-1, keepdims=True)               # XLU cross-lane reduce
    lse = jnp.log(jnp.sum(jnp.exp(logits - m), axis=-1, keepdims=True)) + m
    o_ref[...] = (logits - lse).astype(o_ref.dtype)


def ctc_alignment_forward(x, weight, bias, *, row_tile=None):
    """Inference forward of CTCAlignment: log_softmax(x @ W^T + b, axis=-1).

    Args:
      x:      (B, T, D) float32 input features.
      weight: (V+1, D)  float32 (PyTorch nn.Linear weight layout).
      bias:   (V+1,)    float32.
      row_tile: optional override for the (B*T) row tile.
    Returns:
      (B, T, V+1) float32 log-probabilities.
    """
    B, T, D = x.shape
    V1 = weight.shape[0]
    M = B * T

    d_pad = _round_up(D, 128)
    v_pad = _round_up(V1, 128)

    tm = row_tile if row_tile is not None else _select_row_tile(M, d_pad, v_pad)
    tm = max(8, _round_up(tm, 8))
    m_pad = _round_up(M, tm)
    grid_m = m_pad // tm

    # bf16 inputs for the MXU; zero-pad feature/row dims (zeros are harmless
    # under the contraction, padded rows are sliced off afterwards).
    x2 = x.reshape(M, D).astype(jnp.bfloat16)
    if m_pad != M or d_pad != D:
        x2 = jnp.pad(x2, ((0, m_pad - M), (0, d_pad - D)))

    w = weight.astype(jnp.bfloat16)           # keep (V+1, D) layout, no transpose copy
    if v_pad != V1 or d_pad != D:
        w = jnp.pad(w, ((0, v_pad - V1), (0, d_pad - D)))

    b = bias.astype(jnp.float32)
    if v_pad != V1:
        # Padded vocab columns must not perturb the log-sum-exp.
        b = jnp.pad(b, (0, v_pad - V1), constant_values=-1e30)
    b = b.reshape(1, v_pad)

    # Explicit VMEM budget (v7x has only 64 MiB per TensorCore).
    vmem_est = (2 * (v_pad * d_pad * 2) + 2 * v_pad * 4
                + 2 * tm * d_pad * 2 + 2 * tm * v_pad * 4)
    vmem_limit = min(56 * 1024 * 1024,
                     max(32 * 1024 * 1024, (vmem_est * 3) // 2))

    cost = pl.CostEstimate(
        flops=2 * m_pad * d_pad * v_pad + 5 * m_pad * v_pad,
        transcendentals=m_pad * v_pad,
        bytes_accessed=(m_pad * d_pad * 2            # x (bf16)
                        + grid_m * v_pad * d_pad * 2  # resident weight refetch bound
                        + m_pad * v_pad * 4),         # output (f32)
    )

    out = pl.pallas_call(
        _proj_logsoftmax_kernel,
        out_shape=jax.ShapeDtypeStruct((m_pad, v_pad), jnp.float32),
        grid_spec=pltpu.PrefetchScalarGridSpec(
            num_scalar_prefetch=0,
            grid=(grid_m,),
            in_specs=[
                pl.BlockSpec((tm, d_pad), lambda i: (i, 0)),      # x row tile (bf16)
                pl.BlockSpec((v_pad, d_pad), lambda i: (0, 0)),   # resident weight (bf16)
                pl.BlockSpec((1, v_pad), lambda i: (0, 0)),       # bias (f32)
            ],
            out_specs=pl.BlockSpec((tm, v_pad), lambda i: (i, 0)),
        ),
        compiler_params=pltpu.CompilerParams(
            dimension_semantics=("parallel",),   # lets v7x shard rows across both TCs
            vmem_limit_bytes=vmem_limit,
        ),
        cost_estimate=cost,
    )(x2, w, b)

    return out[:M, :V1].reshape(B, T, V1)


if __name__ == "__main__":
    # Small deterministic shapes consistent with the module's forward:
    B, T, D = 2, 8, 32          # batch, time, input_dim
    vocab_size = 127            # => V+1 = 128 classes
    V1 = vocab_size + 1

    key = jax.random.PRNGKey(0)
    kx, kw, kb = jax.random.split(key, 3)
    x = jax.random.normal(kx, (B, T, D), dtype=jnp.float32)
    # Deterministic synthetic parameters (nn.Linear(input_dim, vocab_size+1) shapes).
    weight = jax.random.normal(kw, (V1, D), dtype=jnp.float32) * 0.05
    bias = jax.random.normal(kb, (V1,), dtype=jnp.float32) * 0.05

    log_probs = ctc_alignment_forward(x, weight, bias)
    log_probs = jax.block_until_ready(log_probs)
    assert log_probs.shape == (B, T, V1)

    # Reference with the same bf16 input rounding (tight check on the math).
    xb = x.astype(jnp.bfloat16).astype(jnp.float32)
    wb = weight.astype(jnp.bfloat16).astype(jnp.float32)
    ref_bf = jax.nn.log_softmax(xb @ wb.T + bias, axis=2)
    assert jnp.allclose(log_probs, ref_bf, atol=2e-3, rtol=2e-3)

    # Full-precision reference (semantic check; bf16 inputs cost a little accuracy).
    ref_f32 = jax.nn.log_softmax(x @ weight.T + bias, axis=2)
    assert jnp.allclose(log_probs, ref_f32, atol=3e-2, rtol=3e-2)

    print("KERNEL_OK")
</pallas_src>

<mosaic_0001>
module attributes {stable_mosaic.version = 11 : i64} {
  func.func @_proj_logsoftmax_kernel(%arg0: i32, %arg1: memref<16x128xbf16, #tpu.memory_space<vmem>>, %arg2: memref<128x128xbf16, #tpu.memory_space<vmem>>, %arg3: memref<1x128xf32, #tpu.memory_space<vmem>>, %arg4: memref<16x128xf32, #tpu.memory_space<vmem>>) attributes {dimension_semantics = [#tpu.dimension_semantics<parallel>], iteration_bounds = array<i64: 1>, scalar_prefetch = 0 : i64, scratch_operands = 0 : i64, tpu.core_type = #tpu.core_type<tc>, window_params = [{transform_indices = @transform_0, window_bounds = array<i64: 16, 128>}, {pipeline_mode = #tpu.pipeline_mode<synchronous>, transform_indices = @transform_1, window_bounds = array<i64: 128, 128>}, {pipeline_mode = #tpu.pipeline_mode<synchronous>, transform_indices = @transform_2, window_bounds = array<i64: 1, 128>}, {transform_indices = @transform_3, window_bounds = array<i64: 16, 128>}]} {
    %c0 = arith.constant 0 : index
    %c0_0 = arith.constant 0 : index
    %0 = vector.load %arg1[%c0, %c0_0] : memref<16x128xbf16, #tpu.memory_space<vmem>>, vector<16x128xbf16>
    %c0_1 = arith.constant 0 : index
    %c0_2 = arith.constant 0 : index
    %1 = vector.load %arg2[%c0_1, %c0_2] : memref<128x128xbf16, #tpu.memory_space<vmem>>, vector<128x128xbf16>
    %cst = arith.constant dense<0.000000e+00> : vector<16x128xf32>
    %2 = tpu.matmul %0, %1, %cst {dimension_numbers = #tpu.dot_dimension_numbers<[1], [1], [0], [0], [0, 0, 1, 0], [], []>} : vector<16x128xbf16>, vector<128x128xbf16>, vector<16x128xf32> -> vector<16x128xf32>
    %c0_3 = arith.constant 0 : index
    %c0_4 = arith.constant 0 : index
    %3 = vector.load %arg3[%c0_3, %c0_4] : memref<1x128xf32, #tpu.memory_space<vmem>>, vector<1x128xf32>
    %4 = vector.broadcast %3 : vector<1x128xf32> to vector<16x128xf32>
    %5 = arith.addf %2, %4 : vector<16x128xf32>
    %cst_5 = arith.constant dense<0xFF800000> : vector<16xf32>
    %6 = vector.multi_reduction <maximumf>, %5, %cst_5 [1] : vector<16x128xf32> to vector<16xf32>
    %7 = vector.shape_cast %6 : vector<16xf32> to vector<16x1xf32>
    %8 = vector.broadcast %7 : vector<16x1xf32> to vector<16x128xf32>
    %9 = arith.subf %5, %8 : vector<16x128xf32>
    %10 = math.exp %9 : vector<16x128xf32>
    %cst_6 = arith.constant dense<0.000000e+00> : vector<16xf32>
    %11 = vector.multi_reduction <add>, %10, %cst_6 [1] : vector<16x128xf32> to vector<16xf32>
    %12 = vector.shape_cast %11 : vector<16xf32> to vector<16x1xf32>
    %13 = math.log %12 : vector<16x1xf32>
    %14 = arith.addf %13, %7 : vector<16x1xf32>
    %15 = vector.broadcast %14 : vector<16x1xf32> to vector<16x128xf32>
    %16 = arith.subf %5, %15 : vector<16x128xf32>
    %c0_7 = arith.constant 0 : index
    %c0_8 = arith.constant 0 : index
    %17 = vector.load %arg4[%c0_7, %c0_8] : memref<16x128xf32, #tpu.memory_space<vmem>>, vector<16x128xf32>
    tpu.vector_store %arg4[%c0_7, %c0_8], %16 {strides = array<i32>} : memref<16x128xf32, #tpu.memory_space<vmem>>, vector<16x128xf32>,
    return
  }
  func.func @transform_0(%arg0: i32) -> (i32, i32) {
    %c0_i32 = arith.constant 0 : i32
    %c0_i32_0 = arith.constant 0 : i32
    return %arg0, %c0_i32 : i32, i32
  }
  func.func @transform_1(%arg0: i32) -> (i32, i32) {
    %c0_i32 = arith.constant 0 : i32
    %c0_i32_0 = arith.constant 0 : i32
    %c0_i32_1 = arith.constant 0 : i32
    return %c0_i32, %c0_i32_0 : i32, i32
  }
  func.func @transform_2(%arg0: i32) -> (i32, i32) {
    %c0_i32 = arith.constant 0 : i32
    %c0_i32_0 = arith.constant 0 : i32
    %c0_i32_1 = arith.constant 0 : i32
    return %c0_i32, %c0_i32_0 : i32, i32
  }
  func.func @transform_3(%arg0: i32) -> (i32, i32) {
    %c0_i32 = arith.constant 0 : i32
    %c0_i32_0 = arith.constant 0 : i32
    return %arg0, %c0_i32 : i32, i32
  }
}

</mosaic_0001>

<llo_original>
// kernel: tpu_custom_call.1
$region0: #{tpu_custom_call.1}
  #allocation0 [shape = 'u32[]', space=smem, size = 0x4, offset = 0x4, fixed_abs, tag = 'smem constant byte address 0x4 - core index']
  #allocation1 [shape = 'u32[72,128]{1,0:T(1,128)}', space=vmem, size = 0x9000, scoped, tag = 'internal scratch']
  %s0 = inlined_call_operand.hbm [shape: bf16[16,128], index: 0, kind: input, shape index: {}]
  %s1 = inlined_call_operand.hbm [shape: bf16[128,128], index: 1, kind: input, shape index: {}]
  %s2 = inlined_call_operand.vmem [shape: f32[1,128], index: 2, kind: input, shape index: {}]
  %s3 = inlined_call_operand.hbm [shape: f32[16,128], index: 3, kind: output, shape index: {}]
  %s4 = sld [smem:[#allocation0]]
  $region30: #{tpu_custom_call.1} parent=0
    _
  %s6 = ssub.s32 1, %s4
  %s7 = scalar_select 0, %s6, %s4
  $region1: #{tpu_custom_call.1} parent=0
    #allocation2 [shape = 'u8[4096]{0}', space=vmem, size = 0x1000, scoped, tag = 'input window, operand 0, single buffered']
    #allocation3 [shape = 's32[1]{0}', space=sflag, size = 0x4, scoped, tag = 'scoped memory for tpu_custom_call.1']
    #allocation4 [shape = 's32[1]{0}', space=sflag, size = 0x4, scoped, tag = 'scoped memory for tpu_custom_call.1']
    #allocation5 [shape = 'u8[32768]{0}', space=vmem, size = 0x8000, scoped, tag = 'input window, operand 1, single buffered']
    #allocation6 [shape = 's32[1]{0}', space=sflag, size = 0x4, scoped, tag = 'scoped memory for tpu_custom_call.1']
    #allocation7 [shape = 'u8[8192]{0}', space=vmem, size = 0x2000, scoped, tag = 'output window, operand 0, single buffered']
    %8 = vsyncpa [#allocation3], 0
    %9 = vsyncpa [#allocation6], 0
    %10 = vsyncpa [#allocation4], 0
    // Predicated region
    $region2: #{tpu_custom_call.1} parent=1 // pred_check
      _
    $region3: #{tpu_custom_call.1} parent=1 // pred_check_branch
      %12 = sbr.rel (0) target = $region5
    $region4: #{tpu_custom_call.1} parent=1 // pred_region
      %14 = vsyncadd [#allocation3], 0
      %s15 = sshll.u32 %s0, 4
      %s16 = int_to_ptr.hbm [resolvable:$true] %s15
      %s17 = sshll.u32 [#allocation2], 4
      %s18 = int_to_ptr.vmem [resolvable:$true] %s17
      %23 = dma.hbm_to_vmem [thread:$0]  %s16, 128, %s18, [#allocation3], 64, 64, 4
    $region5: #{tpu_custom_call.1} parent=1 // pred_fallthru
      _
    // Predicated region
    $region6: #{tpu_custom_call.1} parent=1 // pred_check
      _
    $region7: #{tpu_custom_call.1} parent=1 // pred_check_branch
      %25 = sbr.rel (0) target = $region9
    $region8: #{tpu_custom_call.1} parent=1 // pred_region
      %27 = vsyncadd [#allocation6], 0
      %s28 = sshll.u32 %s1, 4
      %s29 = int_to_ptr.hbm [resolvable:$true] %s28
      %s30 = sshll.u32 [#allocation5], 4
      %s31 = int_to_ptr.vmem [resolvable:$true] %s30
      %36 = dma.hbm_to_vmem [thread:$0]  %s29, 1024, %s31, [#allocation6], 64, 64, 4
    $region9: #{tpu_custom_call.1} parent=1 // pred_fallthru
      _
    // Predicated region
    $region10: #{tpu_custom_call.1} parent=1 // pred_check
      _
    $region11: #{tpu_custom_call.1} parent=1 // pred_check_branch
      %38 = sbr.rel (0) target = $region13
    $region12: #{tpu_custom_call.1} parent=1 // pred_region
      _
    $region13: #{tpu_custom_call.1} parent=1 // pred_fallthru
      _
    // Predicated region
    $region14: #{tpu_custom_call.1} parent=1 // pred_check
      _
    $region15: #{tpu_custom_call.1} parent=1 // pred_check_branch
      %40 = sbr.rel (0) target = $region17
    $region16: #{tpu_custom_call.1} parent=1 // pred_region
      %42 = dma.done [#allocation3], 128
    $region17: #{tpu_custom_call.1} parent=1 // pred_fallthru
      _
    // Predicated region
    $region18: #{tpu_custom_call.1} parent=1 // pred_check
      _
    $region19: #{tpu_custom_call.1} parent=1 // pred_check_branch
      %44 = sbr.rel (0) target = $region21
    $region20: #{tpu_custom_call.1} parent=1 // pred_region
      %46 = dma.done [#allocation6], 1024
    $region21: #{tpu_custom_call.1} parent=1 // pred_fallthru
      _
    %v47 = vld [vmem:[#allocation2] sm:$0xf]
    %v48 = vld [vmem:[#allocation2 + $0x4] sm:$0xf]
    %v49 = vld [vmem:[#allocation5] sm:$0xf]
    %v50 = vld [vmem:[#allocation5 + $0x4] sm:$0xf]
    %v51 = vld [vmem:[#allocation5 + $0x8] sm:$0xf]
    %v52 = vld [vmem:[#allocation5 + $0xc] sm:$0xf]
    %v53 = vld [vmem:[#allocation5 + $0x10] sm:$0xf]
    %v54 = vld [vmem:[#allocation5 + $0x14] sm:$0xf]
    %v55 = vld [vmem:[#allocation5 + $0x18] sm:$0xf]
    %v56 = vld [vmem:[#allocation5 + $0x1c] sm:$0xf]
    %v57 = vld [vmem:[#allocation5 + $0x20] sm:$0xf]
    %v58 = vld [vmem:[#allocation5 + $0x24] sm:$0xf]
    %v59 = vld [vmem:[#allocation5 + $0x28] sm:$0xf]
    %v60 = vld [vmem:[#allocation5 + $0x2c] sm:$0xf]
    %v61 = vld [vmem:[#allocation5 + $0x30] sm:$0xf]
    %v62 = vld [vmem:[#allocation5 + $0x34] sm:$0xf]
    %v63 = vld [vmem:[#allocation5 + $0x38] sm:$0xf]
    %v64 = vld [vmem:[#allocation5 + $0x3c] sm:$0xf]
    %v65 = vld [vmem:[%s2] sm:$0x1]
    %v67 = vperm.slane %v65, 0
    %v71 = vunpack.c.l.b16 %v47
    %v72 = vunpack.c.l.b16 %v48
    %v73 = vpack.c.b16 %v72, %v71
    %v91 = vunpack.c.l.b16 %v49
    %v92 = vunpack.c.l.b16 %v50
    %v93 = vunpack.c.l.b16 %v51
    %v94 = vunpack.c.l.b16 %v52
    %v95 = vunpack.c.l.b16 %v53
    %v96 = vunpack.c.l.b16 %v54
    %v97 = vunpack.c.l.b16 %v55
    %v98 = vunpack.c.l.b16 %v56
    %v99 = vunpack.c.l.b16 %v57
    %v100 = vunpack.c.l.b16 %v58
    %v101 = vunpack.c.l.b16 %v59
    %v102 = vunpack.c.l.b16 %v60
    %v103 = vunpack.c.l.b16 %v61
    %v104 = vunpack.c.l.b16 %v62
    %v105 = vunpack.c.l.b16 %v63
    %v106 = vunpack.c.l.b16 %v64
    %v107 = vpack.c.b16 %v92, %v91
    %v108 = vpack.c.b16 %v94, %v93
    %v109 = vpack.c.b16 %v96, %v95
    %v110 = vpack.c.b16 %v98, %v97
    %v111 = vpack.c.b16 %v100, %v99
    %v112 = vpack.c.b16 %v102, %v101
    %v113 = vpack.c.b16 %v104, %v103
    %v114 = vpack.c.b16 %v106, %v105
    %123 = vmatpush.bf16.xpose.msra.mxu0 %v114
    %124 = vmatpush.bf16.xpose.msra.mxu0 %v113
    %125 = vmatpush.bf16.xpose.msra.mxu0 %v112
    %126 = vmatpush.bf16.xpose.msra.mxu0 %v111
    %127 = vmatpush.bf16.xpose.msra.mxu0 %v110
    %128 = vmatpush.bf16.xpose.msra.mxu0 %v109
    %129 = vmatpush.bf16.xpose.msra.mxu0 %v108
    %130 = vmatpush.bf16.xpose.msra.mxu0 %v107
    %131 = vmatmul.bf16.gmra.mxu0 %v73
    %v132 = vpop.f32.mrf.mxu0
    %v133 = vadd.f32 %v67, %v132
    %v134 = vpop.f32.mrf.mxu0
    %v135 = vadd.f32 %v67, %v134
    %136 = vdwg.mxu0
    %137 = vmax.xlane.f32.xlu0 %v133
    %v138 = vpop.xlane.xlu0 %137
    %139 = vmax.xlane.f32.xlu0 %v135
    %v140 = vpop.xlane.xlu0 %139
    %v141 = vsub.f32 %v133, %v138
    %v142 = vsub.f32 %v135, %v140
    %v143 = vmul.f32 %v141, 1.442695
    %v144 = vpow.pop %v143
    %v145 = vmul.f32 %v142, 1.442695
    %v146 = vpow.pop %v145
    %147 = vadd.xlane.f32.xlu0 %v144
    %v148 = vpop.xlane.xlu0 %147
    %149 = vadd.xlane.f32.xlu0 %v146
    %v150 = vpop.xlane.xlu0 %149
    %v151 = vlog2.pop %v148
    %v152 = vmul.f32 %v151, 0.6931472
    %v153 = vlog2.pop %v150
    %v154 = vmul.f32 %v153, 0.6931472
    %v155 = vadd.f32 %v152, %v138
    %v156 = vadd.f32 %v154, %v140
    %v157 = vsub.f32 %v133, %v155
    %v158 = vsub.f32 %v135, %v156
    %159 = vst [vmem:[#allocation7] sm:$0xff] %v157
    %160 = vst [vmem:[#allocation7 + $0x8] sm:$0xff] %v158
    // Predicated region
    $region22: #{tpu_custom_call.1} parent=1 // pred_check
      _
    $region23: #{tpu_custom_call.1} parent=1 // pred_check_branch
      %162 = sbr.rel (0) target = $region25
    $region24: #{tpu_custom_call.1} parent=1 // pred_region
      %164 = vsyncadd [#allocation4], 0
      %s165 = sshll.u32 [#allocation7], 4
      %s166 = int_to_ptr.vmem [resolvable:$true] %s165
      %s167 = sshll.u32 %s3, 4
      %s168 = int_to_ptr.hbm [resolvable:$true] %s167
      %173 = dma.vmem_to_hbm [thread:$0]  %s166, 256, %s168, [#allocation4], 128, 128, 8
    $region25: #{tpu_custom_call.1} parent=1 // pred_fallthru
      _
    // Predicated region
    $region26: #{tpu_custom_call.1} parent=1 // pred_check
      _
    $region27: #{tpu_custom_call.1} parent=1 // pred_check_branch
      %175 = sbr.rel (0) target = $region29
    $region28: #{tpu_custom_call.1} parent=1 // pred_region
      %177 = dma.done [#allocation4], 256
    $region29: #{tpu_custom_call.1} parent=1 // pred_fallthru
      _
    %178 = vsyncpa [#allocation3], 1
    %179 = vsyncpa [#allocation6], 1
    %180 = vsyncpa [#allocation4], 1

</llo_original>
